<compile_context>
chip_gen: v5e
topology: v5e:2x2
jax: 0.10.0
libtpu: 0.0.40
codegen_flags: <defaults>
</compile_context>

<pallas_src>
import functools

import jax
import jax.numpy as jnp
from jax.experimental import pallas as pl
from jax.experimental.pallas import tpu as pltpu

LANE = 128       # TPU lane width
SUBLANE = 16     # batch-tile alignment (covers f32 and bf16 sublane packing)


def _round_up(n, m):
    return ((n + m - 1) // m) * m


def _pad2d(a, rows, cols, fill=0.0, dtype=None):
    dtype = dtype or a.dtype
    out = jnp.full((rows, cols), fill, dtype=dtype)
    return out.at[: a.shape[0], : a.shape[1]].set(a.astype(dtype))


def _make_mlp_softmax_kernel(num_layers):
    """Kernel over one batch tile: num_layers Linear layers (ReLU on all but
    the last), then a row softmax.  Ref order: x, (w_0, b_0), ..., out."""

    def kernel(*refs):
        x_ref, out_ref = refs[0], refs[-1]
        wb_refs = refs[1:-1]
        cdt = wb_refs[0].dtype                    # MXU-input dtype (f32/bf16)
        h = x_ref[...]
        logits = None
        for li in range(num_layers):
            w_ref = wb_refs[2 * li]
            b_ref = wb_refs[2 * li + 1]
            z = jnp.dot(h.astype(cdt), w_ref[...],
                        preferred_element_type=jnp.float32) + b_ref[...]
            if li < num_layers - 1:
                h = jnp.maximum(z, 0.0)           # hidden activation (f32)
            else:
                logits = z                        # output layer: no activation
        # Numerically stable softmax; padded class columns carry a -1e30 f32
        # bias and therefore underflow to exactly zero probability.
        m = jnp.max(logits, axis=1, keepdims=True)
        e = jnp.exp(logits - m)
        denom = jnp.sum(e, axis=1, keepdims=True)
        r = pl.reciprocal(denom, approx=True)     # EUP slot (cheap)
        r = r * (2.0 - denom * r)                 # one Newton step -> ~f32 exact
        out_ref[...] = (e * r).astype(out_ref.dtype)

    return kernel


@functools.partial(jax.jit,
                   static_argnames=("tile_b", "compute_dtype", "out_dtype"))
def neural_net_forward(x, params, *, tile_b=1024,
                       compute_dtype=jnp.bfloat16, out_dtype=jnp.bfloat16):
    """Forward pass of NeuralNet.

    x:      (B, input_size) float32.
    params: list of (w, b), w: (in, out) = PyTorch weight.T, b: (1, out).
            ReLU on every layer except the last; last layer gets softmax.
    """
    num_layers = len(params)
    B, D = x.shape

    # Lane-pad hidden/class dims to 128; input feature dim stays at real D.
    dims = [D] + [_round_up(w.shape[1], LANE) for (w, _) in params]

    padded = []
    for li, (w, b) in enumerate(params):
        is_last = li == num_layers - 1
        w_p = _pad2d(w, dims[li], dims[li + 1], dtype=compute_dtype)
        # Padded class columns get -1e30 so softmax assigns them zero mass.
        # This bias must stay float32 (bf16 would round it to -inf).
        b_p = _pad2d(b, 1, dims[li + 1],
                     fill=(-1e30 if is_last else 0.0), dtype=jnp.float32)
        padded += [w_p, b_p]

    # Batch tiling: single grid step for small batches, >=2 for large ones.
    tile_b = _round_up(min(max(tile_b, SUBLANE), _round_up(B, SUBLANE)), SUBLANE)
    B_pad = _round_up(B, tile_b)
    xp = x.astype(compute_dtype)                  # cast before pad: no f32 copy
    if B_pad != B:
        xp = jnp.pad(xp, ((0, B_pad - B), (0, 0)))

    Cp = dims[-1]
    grid = (B_pad // tile_b,)

    in_specs = [pl.BlockSpec((tile_b, D), lambda i: (i, 0))]    # x: streamed
    for arr in padded:                                          # weights/biases
        in_specs.append(pl.BlockSpec(arr.shape, lambda i: (0, 0)))  # VMEM-resident
    out_specs = pl.BlockSpec((tile_b, Cp), lambda i: (i, 0))    # lane-dense store

    out_padded = pl.pallas_call(
        _make_mlp_softmax_kernel(num_layers),
        out_shape=jax.ShapeDtypeStruct((B_pad, Cp), out_dtype),
        grid=grid,
        in_specs=in_specs,
        out_specs=out_specs,
        compiler_params=pltpu.CompilerParams(
            dimension_semantics=("parallel",),    # megacore-shard batch on v7x
            vmem_limit_bytes=32 * 1024 * 1024,    # explicit (v5e default = 16 MiB)
        ),
    )(xp, *padded)

    C = params[-1][0].shape[1]
    return out_padded[:B, :C]


def init_params(key, input_size, hidden_layer, num_classes):
    """PyTorch nn.Linear default init.  Returns [(w, b), ...], w as (in, out)."""
    sizes = [input_size] + list(hidden_layer) + [num_classes]
    params = []
    for i in range(len(sizes) - 1):
        key, kw, kb = jax.random.split(key, 3)
        fan_in, fan_out = sizes[i], sizes[i + 1]
        bound = 1.0 / float(fan_in) ** 0.5
        w = jax.random.uniform(kw, (fan_in, fan_out), minval=-bound,
                               maxval=bound, dtype=jnp.float32)
        b = jax.random.uniform(kb, (1, fan_out), minval=-bound,
                               maxval=bound, dtype=jnp.float32)
        params.append((w, b))
    return params


def reference_forward(x, params):
    h = x
    for li, (w, b) in enumerate(params):
        z = h @ w + b
        h = jax.nn.relu(z) if li < len(params) - 1 else z
    return jax.nn.softmax(h, axis=1)


if __name__ == "__main__":
    # NeuralNet(input_size=32, hidden_layer=[64, 32], num_classes=8)
    input_size, hidden_layer, num_classes = 32, [64, 32], 8

    key = jax.random.PRNGKey(0)
    k_p, k_x, k_x2 = jax.random.split(key, 3)
    params = init_params(k_p, input_size, hidden_layer, num_classes)

    # 1) Small batch, default fast path: bf16 streaming/MXU inputs + bf16
    #    writeback, f32 accumulation/softmax.  Single grid step.
    x = jax.random.normal(k_x, (8, input_size), dtype=jnp.float32)
    out = jax.block_until_ready(neural_net_forward(x, params))
    ref = reference_forward(x, params)
    assert out.shape == (8, num_classes)
    assert out.dtype == jnp.bfloat16
    out_f = out.astype(jnp.float32)
    assert jnp.allclose(out_f, ref, atol=2e-2, rtol=2e-2)
    assert jnp.allclose(jnp.sum(out_f, axis=1), 1.0, atol=2e-2)

    # 2) Non-tile-multiple batch exercising >1 grid step, full f32 path.
    x2 = jax.random.normal(k_x2, (200, input_size), dtype=jnp.float32)
    out2 = jax.block_until_ready(
        neural_net_forward(x2, params, tile_b=128,
                           compute_dtype=jnp.float32, out_dtype=jnp.float32))
    ref2 = reference_forward(x2, params)
    assert out2.shape == (200, num_classes)
    assert jnp.allclose(out2, ref2, atol=5e-3, rtol=5e-3)
    assert jnp.allclose(jnp.sum(out2, axis=1), 1.0, atol=1e-3)

    print("KERNEL_OK")
</pallas_src>

<mosaic_0001>
module attributes {stable_mosaic.version = 11 : i64} {
  func.func @kernel(%arg0: i32, %arg1: memref<16x32xbf16, #tpu.memory_space<vmem>>, %arg2: memref<32x128xbf16, #tpu.memory_space<vmem>>, %arg3: memref<1x128xf32, #tpu.memory_space<vmem>>, %arg4: memref<128x128xbf16, #tpu.memory_space<vmem>>, %arg5: memref<1x128xf32, #tpu.memory_space<vmem>>, %arg6: memref<128x128xbf16, #tpu.memory_space<vmem>>, %arg7: memref<1x128xf32, #tpu.memory_space<vmem>>, %arg8: memref<16x128xbf16, #tpu.memory_space<vmem>>) attributes {dimension_semantics = [#tpu.dimension_semantics<parallel>], iteration_bounds = array<i64: 1>, scalar_prefetch = 0 : i64, scratch_operands = 0 : i64, tpu.core_type = #tpu.core_type<tc>, window_params = [{transform_indices = @transform_0, window_bounds = array<i64: 16, 32>}, {pipeline_mode = #tpu.pipeline_mode<synchronous>, transform_indices = @transform_1, window_bounds = array<i64: 32, 128>}, {pipeline_mode = #tpu.pipeline_mode<synchronous>, transform_indices = @transform_2, window_bounds = array<i64: 1, 128>}, {pipeline_mode = #tpu.pipeline_mode<synchronous>, transform_indices = @transform_3, window_bounds = array<i64: 128, 128>}, {pipeline_mode = #tpu.pipeline_mode<synchronous>, transform_indices = @transform_4, window_bounds = array<i64: 1, 128>}, {pipeline_mode = #tpu.pipeline_mode<synchronous>, transform_indices = @transform_5, window_bounds = array<i64: 128, 128>}, {pipeline_mode = #tpu.pipeline_mode<synchronous>, transform_indices = @transform_6, window_bounds = array<i64: 1, 128>}, {transform_indices = @transform_7, window_bounds = array<i64: 16, 128>}]} {
    %c0 = arith.constant 0 : index
    %c0_0 = arith.constant 0 : index
    %0 = vector.load %arg1[%c0, %c0_0] : memref<16x32xbf16, #tpu.memory_space<vmem>>, vector<16x32xbf16>
    %c0_1 = arith.constant 0 : index
    %c0_2 = arith.constant 0 : index
    %1 = vector.load %arg2[%c0_1, %c0_2] : memref<32x128xbf16, #tpu.memory_space<vmem>>, vector<32x128xbf16>
    %cst = arith.constant dense<0.000000e+00> : vector<16x128xf32>
    %2 = tpu.matmul %0, %1, %cst {dimension_numbers = #tpu.dot_dimension_numbers<[1], [0], [0], [1], [0, 0, 1, 1], [], []>} : vector<16x32xbf16>, vector<32x128xbf16>, vector<16x128xf32> -> vector<16x128xf32>
    %c0_3 = arith.constant 0 : index
    %c0_4 = arith.constant 0 : index
    %3 = vector.load %arg3[%c0_3, %c0_4] : memref<1x128xf32, #tpu.memory_space<vmem>>, vector<1x128xf32>
    %4 = vector.broadcast %3 : vector<1x128xf32> to vector<16x128xf32>
    %5 = arith.addf %2, %4 : vector<16x128xf32>
    %cst_5 = arith.constant 0.000000e+00 : f32
    %6 = vector.broadcast %cst_5 : f32 to vector<16x128xf32>
    %7 = arith.maximumf %5, %6 : vector<16x128xf32>
    %8 = arith.truncf %7 : vector<16x128xf32> to vector<16x128xbf16>
    %c0_6 = arith.constant 0 : index
    %c0_7 = arith.constant 0 : index
    %9 = vector.load %arg4[%c0_6, %c0_7] : memref<128x128xbf16, #tpu.memory_space<vmem>>, vector<128x128xbf16>
    %cst_8 = arith.constant dense<0.000000e+00> : vector<16x128xf32>
    %10 = tpu.matmul %8, %9, %cst_8 {dimension_numbers = #tpu.dot_dimension_numbers<[1], [0], [0], [1], [0, 0, 1, 1], [], []>} : vector<16x128xbf16>, vector<128x128xbf16>, vector<16x128xf32> -> vector<16x128xf32>
    %c0_9 = arith.constant 0 : index
    %c0_10 = arith.constant 0 : index
    %11 = vector.load %arg5[%c0_9, %c0_10] : memref<1x128xf32, #tpu.memory_space<vmem>>, vector<1x128xf32>
    %12 = vector.broadcast %11 : vector<1x128xf32> to vector<16x128xf32>
    %13 = arith.addf %10, %12 : vector<16x128xf32>
    %cst_11 = arith.constant 0.000000e+00 : f32
    %14 = vector.broadcast %cst_11 : f32 to vector<16x128xf32>
    %15 = arith.maximumf %13, %14 : vector<16x128xf32>
    %16 = arith.truncf %15 : vector<16x128xf32> to vector<16x128xbf16>
    %c0_12 = arith.constant 0 : index
    %c0_13 = arith.constant 0 : index
    %17 = vector.load %arg6[%c0_12, %c0_13] : memref<128x128xbf16, #tpu.memory_space<vmem>>, vector<128x128xbf16>
    %cst_14 = arith.constant dense<0.000000e+00> : vector<16x128xf32>
    %18 = tpu.matmul %16, %17, %cst_14 {dimension_numbers = #tpu.dot_dimension_numbers<[1], [0], [0], [1], [0, 0, 1, 1], [], []>} : vector<16x128xbf16>, vector<128x128xbf16>, vector<16x128xf32> -> vector<16x128xf32>
    %c0_15 = arith.constant 0 : index
    %c0_16 = arith.constant 0 : index
    %19 = vector.load %arg7[%c0_15, %c0_16] : memref<1x128xf32, #tpu.memory_space<vmem>>, vector<1x128xf32>
    %20 = vector.broadcast %19 : vector<1x128xf32> to vector<16x128xf32>
    %21 = arith.addf %18, %20 : vector<16x128xf32>
    %cst_17 = arith.constant dense<0xFF800000> : vector<16xf32>
    %22 = vector.multi_reduction <maximumf>, %21, %cst_17 [1] : vector<16x128xf32> to vector<16xf32>
    %23 = vector.shape_cast %22 : vector<16xf32> to vector<16x1xf32>
    %24 = vector.broadcast %23 : vector<16x1xf32> to vector<16x128xf32>
    %25 = arith.subf %21, %24 : vector<16x128xf32>
    %26 = math.exp %25 : vector<16x128xf32>
    %cst_18 = arith.constant dense<0.000000e+00> : vector<16xf32>
    %27 = vector.multi_reduction <add>, %26, %cst_18 [1] : vector<16x128xf32> to vector<16xf32>
    %28 = vector.shape_cast %27 : vector<16xf32> to vector<16x1xf32>
    %29 = tpu.reciprocal %28 {approx = true} : vector<16x1xf32> -> vector<16x1xf32>
    %30 = arith.mulf %28, %29 : vector<16x1xf32>
    %cst_19 = arith.constant 2.000000e+00 : f32
    %31 = vector.broadcast %cst_19 : f32 to vector<16x1xf32>
    %32 = arith.subf %31, %30 : vector<16x1xf32>
    %33 = arith.mulf %29, %32 : vector<16x1xf32>
    %34 = vector.broadcast %33 : vector<16x1xf32> to vector<16x128xf32>
    %35 = arith.mulf %26, %34 : vector<16x128xf32>
    %36 = arith.truncf %35 : vector<16x128xf32> to vector<16x128xbf16>
    %c0_20 = arith.constant 0 : index
    %c0_21 = arith.constant 0 : index
    %37 = vector.load %arg8[%c0_20, %c0_21] : memref<16x128xbf16, #tpu.memory_space<vmem>>, vector<16x128xbf16>
    tpu.vector_store %arg8[%c0_20, %c0_21], %36 {strides = array<i32>} : memref<16x128xbf16, #tpu.memory_space<vmem>>, vector<16x128xbf16>,
    return
  }
  func.func @transform_0(%arg0: i32) -> (i32, i32) {
    %c0_i32 = arith.constant 0 : i32
    %c0_i32_0 = arith.constant 0 : i32
    return %arg0, %c0_i32 : i32, i32
  }
  func.func @transform_1(%arg0: i32) -> (i32, i32) {
    %c0_i32 = arith.constant 0 : i32
    %c0_i32_0 = arith.constant 0 : i32
    %c0_i32_1 = arith.constant 0 : i32
    return %c0_i32, %c0_i32_0 : i32, i32
  }
  func.func @transform_2(%arg0: i32) -> (i32, i32) {
    %c0_i32 = arith.constant 0 : i32
    %c0_i32_0 = arith.constant 0 : i32
    %c0_i32_1 = arith.constant 0 : i32
    return %c0_i32, %c0_i32_0 : i32, i32
  }
  func.func @transform_3(%arg0: i32) -> (i32, i32) {
    %c0_i32 = arith.constant 0 : i32
    %c0_i32_0 = arith.constant 0 : i32
    %c0_i32_1 = arith.constant 0 : i32
    return %c0_i32, %c0_i32_0 : i32, i32
  }
  func.func @transform_4(%arg0: i32) -> (i32, i32) {
    %c0_i32 = arith.constant 0 : i32
    %c0_i32_0 = arith.constant 0 : i32
    %c0_i32_1 = arith.constant 0 : i32
    return %c0_i32, %c0_i32_0 : i32, i32
  }
  func.func @transform_5(%arg0: i32) -> (i32, i32) {
    %c0_i32 = arith.constant 0 : i32
    %c0_i32_0 = arith.constant 0 : i32
    %c0_i32_1 = arith.constant 0 : i32
    return %c0_i32, %c0_i32_0 : i32, i32
  }
  func.func @transform_6(%arg0: i32) -> (i32, i32) {
    %c0_i32 = arith.constant 0 : i32
    %c0_i32_0 = arith.constant 0 : i32
    %c0_i32_1 = arith.constant 0 : i32
    return %c0_i32, %c0_i32_0 : i32, i32
  }
  func.func @transform_7(%arg0: i32) -> (i32, i32) {
    %c0_i32 = arith.constant 0 : i32
    %c0_i32_0 = arith.constant 0 : i32
    return %arg0, %c0_i32 : i32, i32
  }
}

</mosaic_0001>

<llo_original>
// kernel: neural_net_forward.1
$region0: #{neural_net_forward.1}
  #allocation0 [shape = 'u32[]', space=smem, size = 0x4, offset = 0x4, fixed_abs, tag = 'smem constant byte address 0x4 - core index']
  #allocation1 [shape = 'u32[72,128]{1,0:T(1,128)}', space=vmem, size = 0x9000, scoped, tag = 'internal scratch']
  %s0 = inlined_call_operand.vmem [shape: bf16[16,32], index: 0, kind: input, shape index: {}]
  %s1 = inlined_call_operand.vmem [shape: bf16[32,128], index: 1, kind: input, shape index: {}]
  %s2 = inlined_call_operand.vmem [shape: f32[1,128], index: 2, kind: input, shape index: {}]
  %s3 = inlined_call_operand.vmem [shape: bf16[128,128], index: 3, kind: input, shape index: {}]
  %s4 = inlined_call_operand.vmem [shape: f32[1,128], index: 4, kind: input, shape index: {}]
  %s5 = inlined_call_operand.vmem [shape: bf16[128,128], index: 5, kind: input, shape index: {}]
  %s6 = inlined_call_operand.vmem [shape: f32[1,128], index: 6, kind: input, shape index: {}]
  %s7 = inlined_call_operand.vmem [shape: bf16[16,128], index: 7, kind: output, shape index: {}]
  %s8 = sld [smem:[#allocation0]]
  $region38: #{neural_net_forward.1} parent=0
    _
  %s10 = ssub.s32 1, %s8
  %s11 = scalar_select 0, %s10, %s8
  // Predicated region
  $region2: #{neural_net_forward.1} parent=0 // pred_check
    _
  $region3: #{neural_net_forward.1} parent=0 // pred_check_branch
    %13 = sbr.rel (0) target = $region5
  $region4: #{neural_net_forward.1} parent=0 // pred_region
    _
  $region5: #{neural_net_forward.1} parent=0 // pred_fallthru
    _
  // Predicated region
  $region6: #{neural_net_forward.1} parent=0 // pred_check
    _
  $region7: #{neural_net_forward.1} parent=0 // pred_check_branch
    %15 = sbr.rel (0) target = $region9
  $region8: #{neural_net_forward.1} parent=0 // pred_region
    _
  $region9: #{neural_net_forward.1} parent=0 // pred_fallthru
    _
  // Predicated region
  $region10: #{neural_net_forward.1} parent=0 // pred_check
    _
  $region11: #{neural_net_forward.1} parent=0 // pred_check_branch
    %17 = sbr.rel (0) target = $region13
  $region12: #{neural_net_forward.1} parent=0 // pred_region
    _
  $region13: #{neural_net_forward.1} parent=0 // pred_fallthru
    _
  // Predicated region
  $region14: #{neural_net_forward.1} parent=0 // pred_check
    _
  $region15: #{neural_net_forward.1} parent=0 // pred_check_branch
    %19 = sbr.rel (0) target = $region17
  $region16: #{neural_net_forward.1} parent=0 // pred_region
    _
  $region17: #{neural_net_forward.1} parent=0 // pred_fallthru
    _
  // Predicated region
  $region18: #{neural_net_forward.1} parent=0 // pred_check
    _
  $region19: #{neural_net_forward.1} parent=0 // pred_check_branch
    %21 = sbr.rel (0) target = $region21
  $region20: #{neural_net_forward.1} parent=0 // pred_region
    _
  $region21: #{neural_net_forward.1} parent=0 // pred_fallthru
    _
  // Predicated region
  $region22: #{neural_net_forward.1} parent=0 // pred_check
    _
  $region23: #{neural_net_forward.1} parent=0 // pred_check_branch
    %23 = sbr.rel (0) target = $region25
  $region24: #{neural_net_forward.1} parent=0 // pred_region
    _
  $region25: #{neural_net_forward.1} parent=0 // pred_fallthru
    _
  // Predicated region
  $region26: #{neural_net_forward.1} parent=0 // pred_check
    _
  $region27: #{neural_net_forward.1} parent=0 // pred_check_branch
    %25 = sbr.rel (0) target = $region29
  $region28: #{neural_net_forward.1} parent=0 // pred_region
    _
  $region29: #{neural_net_forward.1} parent=0 // pred_fallthru
    _
  %v27 = vld [vmem:[%s0] sm:$0xf]
  %v28 = vld [vmem:[%s0 + $0x4] sm:$0xf]
  %v29 = vld [vmem:[%s1] sm:$0xf]
  %v30 = vld [vmem:[%s1 + $0x4] sm:$0xf]
  %v31 = vld [vmem:[%s1 + $0x8] sm:$0xf]
  %v32 = vld [vmem:[%s1 + $0xc] sm:$0xf]
  %v33 = vld [vmem:[%s2] sm:$0x1]
  %v35 = vperm.slane %v33, 0
  %v39 = vunpack.c.l.b16 %v27
  %v40 = vunpack.c.l.b16 %v28
  %v41 = vpack.c.b16 %v40, %v39
  %v46 = vunpack.c.l.b16 %v29
  %v47 = vunpack.c.l.b16 %v30
  %v48 = vunpack.c.l.b16 %v31
  %v49 = vunpack.c.l.b16 %v32
  %v50 = vpack.c.b16 %v47, %v46
  %v51 = vpack.c.b16 %v49, %v48
  %vm54 = vcmask 261120
  %v56 = vsel %vm54, %v41, 0
  %58 = vmatpush.bf16.msra.mxu0 0
  %59 = vmatpush.bf16.msra.mxu0 0
  %60 = vmatpush.bf16.msra.mxu0 0
  %61 = vmatpush.bf16.msra.mxu0 0
  %62 = vmatpush.bf16.msra.mxu0 0
  %63 = vmatpush.bf16.msra.mxu0 0
  %64 = vmatpush.bf16.msra.mxu0 %v51
  %65 = vmatpush.bf16.msra.mxu0 %v50
  %66 = vmatmul.bf16.gmra.mxu0 %v56
  %v67 = vpop.f32.mrf.mxu0
  %v68 = vadd.f32 %v35, %v67
  %v69 = vpop.f32.mrf.mxu0
  %v70 = vadd.f32 %v35, %v69
  %71 = vdwg.mxu0
  %v72 = vmax.f32 %v68, 0.0
  %v73 = vmax.f32 %v70, 0.0
  %v74 = vpack.c.bf16 %v73, %v72
  %v75 = vld [vmem:[%s3] sm:$0xf]
  %v76 = vld [vmem:[%s3 + $0x4] sm:$0xf]
  %v77 = vld [vmem:[%s3 + $0x8] sm:$0xf]
  %v78 = vld [vmem:[%s3 + $0xc] sm:$0xf]
  %v79 = vld [vmem:[%s3 + $0x10] sm:$0xf]
  %v80 = vld [vmem:[%s3 + $0x14] sm:$0xf]
  %v81 = vld [vmem:[%s3 + $0x18] sm:$0xf]
  %v82 = vld [vmem:[%s3 + $0x1c] sm:$0xf]
  %v83 = vld [vmem:[%s3 + $0x20] sm:$0xf]
  %v84 = vld [vmem:[%s3 + $0x24] sm:$0xf]
  %v85 = vld [vmem:[%s3 + $0x28] sm:$0xf]
  %v86 = vld [vmem:[%s3 + $0x2c] sm:$0xf]
  %v87 = vld [vmem:[%s3 + $0x30] sm:$0xf]
  %v88 = vld [vmem:[%s3 + $0x34] sm:$0xf]
  %v89 = vld [vmem:[%s3 + $0x38] sm:$0xf]
  %v90 = vld [vmem:[%s3 + $0x3c] sm:$0xf]
  %v91 = vld [vmem:[%s4] sm:$0x1]
  %v93 = vperm.slane %v91, 0
  %v111 = vunpack.c.l.b16 %v75
  %v112 = vunpack.c.l.b16 %v76
  %v113 = vunpack.c.l.b16 %v77
  %v114 = vunpack.c.l.b16 %v78
  %v115 = vunpack.c.l.b16 %v79
  %v116 = vunpack.c.l.b16 %v80
  %v117 = vunpack.c.l.b16 %v81
  %v118 = vunpack.c.l.b16 %v82
  %v119 = vunpack.c.l.b16 %v83
  %v120 = vunpack.c.l.b16 %v84
  %v121 = vunpack.c.l.b16 %v85
  %v122 = vunpack.c.l.b16 %v86
  %v123 = vunpack.c.l.b16 %v87
  %v124 = vunpack.c.l.b16 %v88
  %v125 = vunpack.c.l.b16 %v89
  %v126 = vunpack.c.l.b16 %v90
  %v127 = vpack.c.b16 %v112, %v111
  %v128 = vpack.c.b16 %v114, %v113
  %v129 = vpack.c.b16 %v116, %v115
  %v130 = vpack.c.b16 %v118, %v117
  %v131 = vpack.c.b16 %v120, %v119
  %v132 = vpack.c.b16 %v122, %v121
  %v133 = vpack.c.b16 %v124, %v123
  %v134 = vpack.c.b16 %v126, %v125
  %143 = vmatpush.bf16.msra.mxu0 %v134
  %144 = vmatpush.bf16.msra.mxu0 %v133
  %145 = vmatpush.bf16.msra.mxu0 %v132
  %146 = vmatpush.bf16.msra.mxu0 %v131
  %147 = vmatpush.bf16.msra.mxu0 %v130
  %148 = vmatpush.bf16.msra.mxu0 %v129
  %149 = vmatpush.bf16.msra.mxu0 %v128
  %150 = vmatpush.bf16.msra.mxu0 %v127
  %151 = vmatmul.bf16.gmra.mxu0 %v74
  %v152 = vpop.f32.mrf.mxu0
  %v153 = vadd.f32 %v93, %v152
  %v154 = vpop.f32.mrf.mxu0
  %v155 = vadd.f32 %v93, %v154
  %156 = vdwg.mxu0
  %v157 = vmax.f32 %v153, 0.0
  %v158 = vmax.f32 %v155, 0.0
  %v159 = vpack.c.bf16 %v158, %v157
  %v160 = vld [vmem:[%s5] sm:$0xf]
  %v161 = vld [vmem:[%s5 + $0x4] sm:$0xf]
  %v162 = vld [vmem:[%s5 + $0x8] sm:$0xf]
  %v163 = vld [vmem:[%s5 + $0xc] sm:$0xf]
  %v164 = vld [vmem:[%s5 + $0x10] sm:$0xf]
  %v165 = vld [vmem:[%s5 + $0x14] sm:$0xf]
  %v166 = vld [vmem:[%s5 + $0x18] sm:$0xf]
  %v167 = vld [vmem:[%s5 + $0x1c] sm:$0xf]
  %v168 = vld [vmem:[%s5 + $0x20] sm:$0xf]
  %v169 = vld [vmem:[%s5 + $0x24] sm:$0xf]
  %v170 = vld [vmem:[%s5 + $0x28] sm:$0xf]
  %v171 = vld [vmem:[%s5 + $0x2c] sm:$0xf]
  %v172 = vld [vmem:[%s5 + $0x30] sm:$0xf]
  %v173 = vld [vmem:[%s5 + $0x34] sm:$0xf]
  %v174 = vld [vmem:[%s5 + $0x38] sm:$0xf]
  %v175 = vld [vmem:[%s5 + $0x3c] sm:$0xf]
  %v176 = vld [vmem:[%s6] sm:$0x1]
  %v178 = vperm.slane %v176, 0
  %v196 = vunpack.c.l.b16 %v160
  %v197 = vunpack.c.l.b16 %v161
  %v198 = vunpack.c.l.b16 %v162
  %v199 = vunpack.c.l.b16 %v163
  %v200 = vunpack.c.l.b16 %v164
  %v201 = vunpack.c.l.b16 %v165
  %v202 = vunpack.c.l.b16 %v166
  %v203 = vunpack.c.l.b16 %v167
  %v204 = vunpack.c.l.b16 %v168
  %v205 = vunpack.c.l.b16 %v169
  %v206 = vunpack.c.l.b16 %v170
  %v207 = vunpack.c.l.b16 %v171
  %v208 = vunpack.c.l.b16 %v172
  %v209 = vunpack.c.l.b16 %v173
  %v210 = vunpack.c.l.b16 %v174
  %v211 = vunpack.c.l.b16 %v175
  %v212 = vpack.c.b16 %v197, %v196
  %v213 = vpack.c.b16 %v199, %v198
  %v214 = vpack.c.b16 %v201, %v200
  %v215 = vpack.c.b16 %v203, %v202
  %v216 = vpack.c.b16 %v205, %v204
  %v217 = vpack.c.b16 %v207, %v206
  %v218 = vpack.c.b16 %v209, %v208
  %v219 = vpack.c.b16 %v211, %v210
  %228 = vmatpush.bf16.msra.mxu0 %v219
  %229 = vmatpush.bf16.msra.mxu0 %v218
  %230 = vmatpush.bf16.msra.mxu0 %v217
  %231 = vmatpush.bf16.msra.mxu0 %v216
  %232 = vmatpush.bf16.msra.mxu0 %v215
  %233 = vmatpush.bf16.msra.mxu0 %v214
  %234 = vmatpush.bf16.msra.mxu0 %v213
  %235 = vmatpush.bf16.msra.mxu0 %v212
  %236 = vmatmul.bf16.gmra.mxu0 %v159
  %v237 = vpop.f32.mrf.mxu0
  %v238 = vadd.f32 %v178, %v237
  %v239 = vpop.f32.mrf.mxu0
  %v240 = vadd.f32 %v178, %v239
  %241 = vdwg.mxu0
  %242 = vmax.xlane.f32.xlu0 %v238
  %v243 = vpop.xlane.xlu0 %242
  %244 = vmax.xlane.f32.xlu0 %v240
  %v245 = vpop.xlane.xlu0 %244
  %v246 = vsub.f32 %v238, %v243
  %v247 = vsub.f32 %v240, %v245
  %v248 = vmul.f32 %v246, 1.442695
  %v249 = vpow.pop %v248
  %v250 = vmul.f32 %v247, 1.442695
  %v251 = vpow.pop %v250
  %252 = vadd.xlane.f32.xlu0 %v249
  %v253 = vpop.xlane.xlu0 %252
  %254 = vadd.xlane.f32.xlu0 %v251
  %v255 = vpop.xlane.xlu0 %254
  %v256 = vrcp.pop %v253
  %v257 = vrcp.pop %v255
  %v258 = vmul.f32 %v253, %v256
  %v259 = vmul.f32 %v255, %v257
  %v260 = vsub.f32 2.0, %v258
  %v261 = vsub.f32 2.0, %v259
  %v262 = vmul.f32 %v256, %v260
  %v263 = vmul.f32 %v257, %v261
  %v264 = vmul.f32 %v249, %v262
  %v265 = vmul.f32 %v251, %v263
  %v266 = vpack.c.bf16 %v264, %v264
  %v267 = vpack.c.bf16 %v265, %v265
  %268 = vst [vmem:[%s7] sm:$0xf] %v266
  %269 = vst [vmem:[%s7 + $0x4] sm:$0xf] %v267
  // Predicated region
  $region30: #{neural_net_forward.1} parent=0 // pred_check
    _
  $region31: #{neural_net_forward.1} parent=0 // pred_check_branch
    %271 = sbr.rel (0) target = $region33
  $region32: #{neural_net_forward.1} parent=0 // pred_region
    _
  $region33: #{neural_net_forward.1} parent=0 // pred_fallthru
    _
  // Predicated region
  $region34: #{neural_net_forward.1} parent=0 // pred_check
    _
  $region35: #{neural_net_forward.1} parent=0 // pred_check_branch
    %273 = sbr.rel (0) target = $region37
  $region36: #{neural_net_forward.1} parent=0 // pred_region
    _
  $region37: #{neural_net_forward.1} parent=0 // pred_fallthru
    _

</llo_original>
